<compile_context>
chip_gen: v7x
topology: tpu7x:2x2x1
jax: 0.10.0
libtpu: 0.0.40
codegen_flags: <defaults>
</compile_context>

<pallas_src>
import numpy as np
import jax
import jax.numpy as jnp
from jax.experimental import pallas as pl
from jax.experimental.pallas import tpu as pltpu


# ----------------------------------------------------------------------------
# Helpers
# ----------------------------------------------------------------------------
def _default_num_core_splits() -> int:
    """2 on v7x (two TensorCores per chip), 1 on v5e/v6e/others."""
    try:
        kind = jax.devices()[0].device_kind.lower()
    except Exception:
        return 1
    return 2 if ("v7" in kind or "7x" in kind) else 1


def _pick_tile(n: int, want: int, align: int = 128) -> int:
    """Largest multiple of `align` that divides n and is <= want; else full extent."""
    t = (min(want, n) // align) * align
    while t >= align:
        if n % t == 0:
            return t
        t -= align
    return n  # full-extent block is always a legal block shape


# ----------------------------------------------------------------------------
# Pallas kernel: accumulate  W_full = P_pad^T A P_pad  (Kp x Kp, f32)
# over (row-tile, col-tile) blocks of A, with per-core partial outputs.
# ----------------------------------------------------------------------------
def _w_kernel(a_ref, p_ref, w_ref, ap_acc_ref):
    c = pl.program_id(0)
    i = pl.program_id(1)
    j = pl.program_id(2)
    nj = pl.num_programs(2)
    rows_per_core = pl.num_programs(1)

    tm, tn = a_ref.shape
    Kp = p_ref.shape[1]

    # Output block (1, Kp, Kp) is resident across both reduction axes (i, j);
    # re-initialize it at the start of each core-split slice.
    @pl.when(jnp.logical_and(i == 0, j == 0))
    def _():
        w_ref[...] = jnp.zeros_like(w_ref)

    # Per-row-stripe partial accumulator ap_acc = A[rows, :] @ P_pad  (tm, Kp) f32.
    @pl.when(j == 0)
    def _():
        ap_acc_ref[...] = jnp.zeros_like(ap_acc_ref)

    # Contraction block of the resident P_pad (rows j*tn .. j*tn+tn).
    col_start = pl.multiple_of(j * tn, tn)
    pc = p_ref[pl.ds(col_start, tn), :]                     # (tn, Kp) compute dtype
    a = a_ref[...].astype(pc.dtype)                         # in-kernel cast (f32 -> bf16)

    # A_tile @ P_cols -> (tm, Kp), f32 accumulation on the MXU.
    ap_acc_ref[...] += jnp.dot(a, pc, preferred_element_type=jnp.float32)

    # Hoisted correction matmul: only once per row stripe (last column tile).
    @pl.when(j == nj - 1)
    def _():
        row_start = pl.multiple_of((c * rows_per_core + i) * tm, tm)
        pr = p_ref[pl.ds(row_start, tm), :].astype(jnp.float32)    # (tm, Kp)
        # W += P_rows^T @ (A_rows @ P_pad); contract axis 0 of both operands so
        # no explicit transpose of P_rows is materialized.
        w_ref[0] += jax.lax.dot_general(
            pr, ap_acc_ref[...],
            dimension_numbers=(((0,), (0,)), ((), ())),
            preferred_element_type=jnp.float32)


def _compute_w_vol(P: jax.Array, A: jax.Array, K: int, *,
                   tm: int = 512, tn: int = 1024,
                   compute_dtype=jnp.bfloat16,
                   num_core_splits: int | None = None):
    """Returns (W [K,K] f32, vol [K] f32) computed with a Pallas kernel."""
    N = A.shape[0]
    Kp = 128  # pad cluster axis to one full lane group
    assert 2 <= K < Kp, "requires 2 <= K <= 127 (one lane reserved for the ones column)"
    assert A.shape == (N, N)
    assert P.shape[0] == N and P.shape[1] >= K
    # TODO(synk): for N > ~32k the resident P_pad block should become a per-j
    # tiled BlockSpec; dense (N,N) adjacency at that size is impractical anyway.
    assert N <= 32768, "resident P_pad path assumes N <= 32768"

    if num_core_splits is None:
        num_core_splits = _default_num_core_splits()
    if N % num_core_splits != 0:
        num_core_splits = 1

    n_rows = N // num_core_splits
    tm = _pick_tile(n_rows, tm)          # 128-aligned (bf16 sublane packing safe)
    tn = _pick_tile(N, tn)
    rows_per_core = n_rows // tm
    nj = N // tn

    # Padded P with a ones column at index K: W_full row/col K give the volume
    # terms 1^T A P and 1^T A^T P for free from the MXU.
    P_pad = (jnp.zeros((N, Kp), jnp.float32)
             .at[:, :K].set(P[:, :K].astype(jnp.float32))
             .at[:, K].set(1.0)
             .astype(compute_dtype))

    # Explicit VMEM budget (safe for v7x's 64 MiB physical / 32 MiB scoped default).
    a_item = jnp.dtype(A.dtype).itemsize
    p_item = jnp.dtype(compute_dtype).itemsize
    vmem_need = (2 * tm * tn * a_item        # A tile, double-buffered
                 + 2 * N * Kp * p_item       # resident P_pad (conservative x2)
                 + tm * Kp * 4               # ap_acc scratch
                 + 2 * Kp * Kp * 4)          # output accumulator
    vmem_limit = int(min(max(vmem_need + (4 << 20), 16 << 20), 56 << 20))

    grid = (num_core_splits, rows_per_core, nj)

    w_parts = pl.pallas_call(
        _w_kernel,
        out_shape=jax.ShapeDtypeStruct((num_core_splits, Kp, Kp), jnp.float32),
        grid_spec=pltpu.PrefetchScalarGridSpec(
            num_scalar_prefetch=0,
            grid=grid,
            in_specs=[
                # A tile: rows indexed by (core, i), columns by j. Cast in-kernel.
                pl.BlockSpec((tm, tn),
                             lambda c, i, j: (c * rows_per_core + i, j)),
                # P_pad: whole-array resident block, DMA'd once, sliced in-kernel.
                pl.BlockSpec((N, Kp), lambda c, i, j: (0, 0)),
            ],
            out_specs=pl.BlockSpec((1, Kp, Kp), lambda c, i, j: (c, 0, 0)),
            scratch_shapes=[pltpu.VMEM((tm, Kp), jnp.float32)],
        ),
        compiler_params=pltpu.CompilerParams(
            dimension_semantics=("parallel", "arbitrary", "arbitrary"),
            vmem_limit_bytes=vmem_limit),
    )(A, P_pad)

    W_full = jnp.sum(w_parts, axis=0) if num_core_splits > 1 else w_parts[0]
    W = W_full[:K, :K]
    vol = W_full[K, :K] + W_full[:K, K]                # 1^T(A+A^T)P[:,k]
    return W, vol


# ----------------------------------------------------------------------------
# Loss wrapper (reproduces Prob_Imbalance_Loss.forward semantics)
# ----------------------------------------------------------------------------
class ProbImbalanceLoss:
    def __init__(self, F=None):
        if isinstance(F, int):
            self.sel = F
        elif F is not None:
            Kf = F.shape[0]
            self.sel = 0
            for i in range(Kf - 1):
                for j in range(i + 1, Kf):
                    if F[i, j] + F[j, i] > 0:
                        self.sel += 1

    def __call__(self, P, A, K, normalization='vol_sum', threshold='sort'):
        assert normalization in ['vol_sum', 'vol_min', 'vol_max', 'plain']
        assert threshold in ['sort', 'std', 'naive']
        assert K >= 2, "K must be >= 2 (second largest volume is used)"
        if threshold == 'sort':
            assert hasattr(self, 'sel'), "threshold='sort' requires F at construction"
        eps = jnp.float32(1e-8)

        W, vol = _compute_w_vol(P, A, K)

        # second largest volume
        second_max_vol = jnp.sort(vol)[-2] + eps

        # all pairs k < l (static)
        k_idx, l_idx = np.triu_indices(K, k=1)
        k_idx = jnp.asarray(k_idx)
        l_idx = jnp.asarray(l_idx)

        w_kl = W[k_idx, l_idx]
        w_lk = W[l_idx, k_idx]
        diff = w_kl - w_lk
        ssum = w_kl + w_lk
        vol_k = vol[k_idx]
        vol_l = vol[l_idx]

        if normalization == 'vol_sum':
            curr = jnp.abs(diff) / (vol_k + vol_l + eps) * 2.0
        elif normalization == 'vol_min':
            curr = jnp.abs(diff) / jnp.where(ssum != 0, ssum, 1.0) \
                   * jnp.minimum(vol_k, vol_l) / second_max_vol
        elif normalization == 'vol_max':
            curr = jnp.abs(diff) / (jnp.maximum(vol_k, vol_l) + eps)
        else:  # plain
            curr = jnp.abs(diff) / jnp.where(ssum != 0, ssum, 1.0)

        nonzero = diff != 0
        curr_safe = jnp.where(nonzero, curr, 0.0)
        npairs = curr.shape[0]

        if threshold == 'sort':
            key = jnp.where(nonzero, curr_safe, -jnp.inf)
            kk = min(int(self.sel), npairs)
            top_vals = jax.lax.top_k(key, kk)[0]
            result = jnp.sum(jnp.where(jnp.isfinite(top_vals), top_vals, 0.0))
            return jnp.ones((1,), jnp.float32) - result / jnp.float32(self.sel)
        elif threshold == 'naive':
            cnt = jnp.sum(nonzero.astype(jnp.float32))
            mean = jnp.sum(curr_safe) / jnp.maximum(cnt, 1.0)
            return jnp.where(cnt > 0,
                             jnp.ones((1,), jnp.float32) - mean,
                             jnp.ones((1,), jnp.float32))
        else:  # 'std'
            # TODO(synk): the torch version returns NaN if both lists are empty;
            # here we fall back to 1.0 in that degenerate case.
            cond = (diff * diff - 9.0 * ssum) > 0
            mask_main = nonzero & cond
            mask_std = nonzero & ~cond
            cnt_m = jnp.sum(mask_main.astype(jnp.float32))
            cnt_s = jnp.sum(mask_std.astype(jnp.float32))
            mean_m = jnp.sum(jnp.where(mask_main, curr_safe, 0.0)) / jnp.maximum(cnt_m, 1.0)
            mean_s = jnp.sum(jnp.where(mask_std, curr_safe, 0.0)) / jnp.maximum(cnt_s, 1.0)
            out = jnp.where(cnt_m > 0, 1.0 - mean_m,
                            jnp.where(cnt_s > 0, 1.0 - mean_s, 1.0))
            return jnp.reshape(out, (1,))


# ----------------------------------------------------------------------------
# Pure-JAX reference for sanity checking the kernel output
# ----------------------------------------------------------------------------
def _ref_w_vol(P, A, K, compute_dtype=jnp.float32):
    A32 = A.astype(compute_dtype).astype(jnp.float32)
    P32 = P.astype(compute_dtype).astype(jnp.float32)
    W = P32.T @ A32 @ P32
    vol = jnp.sum((A32 + A32.T) @ P32, axis=0)
    return W[:K, :K], vol[:K]


if __name__ == "__main__":
    N, K = 256, 5
    key = jax.random.PRNGKey(0)
    k1, k2 = jax.random.split(key)

    # Random sparse-ish nonnegative adjacency, random row-softmax probabilities.
    A_raw = jax.random.uniform(k1, (N, N), jnp.float32)
    A = jnp.where(A_raw > 0.9, A_raw, 0.0)
    logits = jax.random.normal(k2, (N, K), jnp.float32)
    P = jax.nn.softmax(logits, axis=-1)

    # Deterministic "parameter": F=3 -> sel=3 (number of top imbalance terms).
    loss_mod = ProbImbalanceLoss(F=3)

    loss = loss_mod(P, A, K, normalization='vol_sum', threshold='sort')
    loss = jax.block_until_ready(loss)
    assert loss.shape == (1,) and np.isfinite(np.asarray(loss)).all()

    # sanity 1: multi-tile / multi-core-split grid path (exercises the hoisted
    # correction matmul and the resident-P in-kernel slicing) vs bf16 reference.
    W_k, vol_k = _compute_w_vol(P, A, K, tm=128, tn=128,
                                compute_dtype=jnp.bfloat16, num_core_splits=2)
    W_r, vol_r = _ref_w_vol(P, A, K, compute_dtype=jnp.bfloat16)
    np.testing.assert_allclose(np.asarray(W_k), np.asarray(W_r), rtol=1e-4, atol=1e-3)
    np.testing.assert_allclose(np.asarray(vol_k), np.asarray(vol_r), rtol=1e-4, atol=1e-3)

    # sanity 2: loose check vs full-f32 reference (covers bf16 rounding of A/P).
    W_f, vol_f = _ref_w_vol(P, A, K, compute_dtype=jnp.float32)
    np.testing.assert_allclose(np.asarray(W_k), np.asarray(W_f), rtol=1e-2, atol=1e-2)
    np.testing.assert_allclose(np.asarray(vol_k), np.asarray(vol_f), rtol=1e-2, atol=1e-2)

    # sanity 3: float32 escape-hatch compute path.
    W_32, vol_32 = _compute_w_vol(P, A, K, tm=128, tn=128,
                                  compute_dtype=jnp.float32, num_core_splits=1)
    np.testing.assert_allclose(np.asarray(W_32), np.asarray(W_f), rtol=1e-2, atol=1e-1)
    np.testing.assert_allclose(np.asarray(vol_32), np.asarray(vol_f), rtol=1e-2, atol=1e-1)

    # sanity 4: all normalization / threshold combinations run and are finite.
    for norm in ['vol_sum', 'vol_min', 'vol_max', 'plain']:
        for thr in ['sort', 'std', 'naive']:
            out = jax.block_until_ready(loss_mod(P, A, K, normalization=norm, threshold=thr))
            assert out.shape == (1,) and np.isfinite(np.asarray(out)).all(), (norm, thr)

    print("KERNEL_OK")
</pallas_src>

<mosaic_0001>
module attributes {stable_mosaic.version = 11 : i64} {
  func.func @_w_kernel(%arg0: i32, %arg1: i32, %arg2: i32, %arg3: memref<256x256xf32, #tpu.memory_space<vmem>>, %arg4: memref<256x128xbf16, #tpu.memory_space<vmem>>, %arg5: memref<1x128x128xf32, #tpu.memory_space<vmem>>, %arg6: memref<256x128xf32, #tpu.memory_space<vmem>>) attributes {dimension_semantics = [#tpu.dimension_semantics<parallel>, #tpu.dimension_semantics<arbitrary>, #tpu.dimension_semantics<arbitrary>], iteration_bounds = array<i64: 1, 1, 1>, scalar_prefetch = 0 : i64, scratch_operands = 1 : i64, tpu.core_type = #tpu.core_type<tc>, window_params = [{transform_indices = @transform_0, window_bounds = array<i64: 256, 256>}, {pipeline_mode = #tpu.pipeline_mode<synchronous>, transform_indices = @transform_1, window_bounds = array<i64: 256, 128>}, {transform_indices = @transform_2, window_bounds = array<i64: 1, 128, 128>}]} {
    %c0_i32 = arith.constant 0 : i32
    %0 = arith.cmpi eq, %arg1, %c0_i32 : i32
    %c0_i32_0 = arith.constant 0 : i32
    %1 = arith.cmpi eq, %arg2, %c0_i32_0 : i32
    %2 = arith.andi %0, %1 : i1
    %3 = arith.extui %2 : i1 to i32
    %c0_i32_1 = arith.constant 0 : i32
    %4 = arith.cmpi ne, %3, %c0_i32_1 : i32
    scf.if %4 {
      %cst_12 = arith.constant 0.000000e+00 : f32
      %21 = vector.broadcast %cst_12 : f32 to vector<1x128x128xf32>
      %c0_13 = arith.constant 0 : index
      %c0_14 = arith.constant 0 : index
      %c0_15 = arith.constant 0 : index
      %22 = vector.load %arg5[%c0_13, %c0_14, %c0_15] : memref<1x128x128xf32, #tpu.memory_space<vmem>>, vector<1x128x128xf32>
      tpu.vector_store %arg5[%c0_13, %c0_14, %c0_15], %21 {strides = array<i32>} : memref<1x128x128xf32, #tpu.memory_space<vmem>>, vector<1x128x128xf32>,
    } else {
    }
    %c0_i32_2 = arith.constant 0 : i32
    %5 = arith.cmpi eq, %arg2, %c0_i32_2 : i32
    %6 = arith.extui %5 : i1 to i32
    %c0_i32_3 = arith.constant 0 : i32
    %7 = arith.cmpi ne, %6, %c0_i32_3 : i32
    scf.if %7 {
      %cst_12 = arith.constant 0.000000e+00 : f32
      %21 = vector.broadcast %cst_12 : f32 to vector<256x128xf32>
      %c0_13 = arith.constant 0 : index
      %c0_14 = arith.constant 0 : index
      %22 = vector.load %arg6[%c0_13, %c0_14] : memref<256x128xf32, #tpu.memory_space<vmem>>, vector<256x128xf32>
      tpu.vector_store %arg6[%c0_13, %c0_14], %21 {strides = array<i32>} : memref<256x128xf32, #tpu.memory_space<vmem>>, vector<256x128xf32>,
    } else {
    }
    %c256_i32 = arith.constant 256 : i32
    %8 = arith.muli %arg2, %c256_i32 : i32
    %9 = tpu.assume_multiple %8, 256 : i32
    %10 = arith.index_cast %9 : i32 to index
    %c0 = arith.constant 0 : index
    %11 = vector.load %arg4[%10, %c0] : memref<256x128xbf16, #tpu.memory_space<vmem>>, vector<256x128xbf16>
    %c0_4 = arith.constant 0 : index
    %c0_5 = arith.constant 0 : index
    %12 = vector.load %arg3[%c0_4, %c0_5] : memref<256x256xf32, #tpu.memory_space<vmem>>, vector<256x256xf32>
    %13 = arith.truncf %12 : vector<256x256xf32> to vector<256x256xbf16>
    %c0_6 = arith.constant 0 : index
    %c0_7 = arith.constant 0 : index
    %14 = vector.load %arg6[%c0_6, %c0_7] : memref<256x128xf32, #tpu.memory_space<vmem>>, vector<256x128xf32>
    %cst = arith.constant dense<0.000000e+00> : vector<256x128xf32>
    %15 = tpu.matmul %13, %11, %cst {dimension_numbers = #tpu.dot_dimension_numbers<[1], [0], [0], [1], [0, 0, 1, 1], [], []>} : vector<256x256xbf16>, vector<256x128xbf16>, vector<256x128xf32> -> vector<256x128xf32>
    %16 = arith.addf %14, %15 : vector<256x128xf32>
    %c0_8 = arith.constant 0 : index
    %c0_9 = arith.constant 0 : index
    %17 = vector.load %arg6[%c0_8, %c0_9] : memref<256x128xf32, #tpu.memory_space<vmem>>, vector<256x128xf32>
    tpu.vector_store %arg6[%c0_8, %c0_9], %16 {strides = array<i32>} : memref<256x128xf32, #tpu.memory_space<vmem>>, vector<256x128xf32>,
    %c0_i32_10 = arith.constant 0 : i32
    %18 = arith.cmpi eq, %arg2, %c0_i32_10 : i32
    %19 = arith.extui %18 : i1 to i32
    %c0_i32_11 = arith.constant 0 : i32
    %20 = arith.cmpi ne, %19, %c0_i32_11 : i32
    scf.if %20 {
      %c1_i32 = arith.constant 1 : i32
      %21 = arith.muli %arg0, %c1_i32 : i32
      %22 = arith.addi %21, %arg1 : i32
      %c256_i32_12 = arith.constant 256 : i32
      %23 = arith.muli %22, %c256_i32_12 : i32
      %24 = tpu.assume_multiple %23, 256 : i32
      %25 = arith.index_cast %24 : i32 to index
      %c0_13 = arith.constant 0 : index
      %26 = vector.load %arg4[%25, %c0_13] : memref<256x128xbf16, #tpu.memory_space<vmem>>, vector<256x128xbf16>
      %27 = arith.extf %26 : vector<256x128xbf16> to vector<256x128xf32>
      %c0_14 = arith.constant 0 : index
      %c0_15 = arith.constant 0 : index
      %c0_16 = arith.constant 0 : index
      %28 = vector.load %arg5[%c0_14, %c0_15, %c0_16] : memref<1x128x128xf32, #tpu.memory_space<vmem>>, vector<1x128x128xf32>
      %29 = vector.shape_cast %28 : vector<1x128x128xf32> to vector<128x128xf32>
      %c0_17 = arith.constant 0 : index
      %c0_18 = arith.constant 0 : index
      %30 = vector.load %arg6[%c0_17, %c0_18] : memref<256x128xf32, #tpu.memory_space<vmem>>, vector<256x128xf32>
      %cst_19 = arith.constant dense<0.000000e+00> : vector<128x128xf32>
      %31 = tpu.matmul %27, %30, %cst_19 {dimension_numbers = #tpu.dot_dimension_numbers<[0], [0], [1], [1], [0, 1, 1, 1], [], []>} : vector<256x128xf32>, vector<256x128xf32>, vector<128x128xf32> -> vector<128x128xf32>
      %32 = arith.addf %29, %31 : vector<128x128xf32>
      %c0_20 = arith.constant 0 : index
      %c0_21 = arith.constant 0 : index
      %c0_22 = arith.constant 0 : index
      %33 = vector.load %arg5[%c0_20, %c0_21, %c0_22] : memref<1x128x128xf32, #tpu.memory_space<vmem>>, vector<1x128x128xf32>
      %34 = vector.shape_cast %33 : vector<1x128x128xf32> to vector<128x128xf32>
      %35 = vector.shape_cast %32 : vector<128x128xf32> to vector<1x128x128xf32>
      tpu.vector_store %arg5[%c0_20, %c0_21, %c0_22], %35 {strides = array<i32>} : memref<1x128x128xf32, #tpu.memory_space<vmem>>, vector<1x128x128xf32>,
    } else {
    }
    return
  }
  func.func @transform_0(%arg0: i32, %arg1: i32, %arg2: i32) -> (i32, i32) {
    %c1_i32 = arith.constant 1 : i32
    %0 = arith.muli %arg0, %c1_i32 : i32
    %1 = arith.addi %0, %arg1 : i32
    %c0_i32 = arith.constant 0 : i32
    return %1, %arg2 : i32, i32
  }
  func.func @transform_1(%arg0: i32, %arg1: i32, %arg2: i32) -> (i32, i32) {
    %c0_i32 = arith.constant 0 : i32
    %c0_i32_0 = arith.constant 0 : i32
    %c0_i32_1 = arith.constant 0 : i32
    return %c0_i32, %c0_i32_0 : i32, i32
  }
  func.func @transform_2(%arg0: i32, %arg1: i32, %arg2: i32) -> (i32, i32, i32) {
    %c0_i32 = arith.constant 0 : i32
    %c0_i32_0 = arith.constant 0 : i32
    %c0_i32_1 = arith.constant 0 : i32
    return %arg0, %c0_i32, %c0_i32_0 : i32, i32, i32
  }
}

</mosaic_0001>

<llo_original>
// kernel: tpu_custom_call.1
$region0: #{tpu_custom_call.1}
  #allocation0 [shape = 'u32[]', space=smem, size = 0x4, offset = 0x4, fixed_abs, tag = 'smem constant byte address 0x4 - core index']
  #allocation1 [shape = 'u32[144,128]{1,0:T(1,128)}', space=vmem, size = 0x12000, scoped, tag = 'internal scratch']
  #allocation2 [shape = 'f32[256,128]{1,0:T(8,128)}', space=vmem, size = 0x20000, scoped, tag = 'scratch operand']
  %s0 = inlined_call_operand.hbm [shape: f32[256,256], index: 0, kind: input, shape index: {}]
  %s1 = inlined_call_operand.hbm [shape: bf16[256,128], index: 1, kind: input, shape index: {}]
  %s2 = inlined_call_operand.hbm [shape: f32[1,128,128], index: 2, kind: output, shape index: {}]
  %s3 = sld [smem:[#allocation0]]
  $region38: #{tpu_custom_call.1} parent=0
    _
  %s5 = ssub.s32 1, %s3
  %s6 = scalar_select 0, %s5, %s3
  $region1: #{tpu_custom_call.1} parent=0
    #allocation3 [shape = 'u8[262144]{0}', space=vmem, size = 0x40000, scoped, tag = 'input window, operand 0, single buffered']
    #allocation4 [shape = 's32[1]{0}', space=sflag, size = 0x4, scoped, tag = 'scoped memory for tpu_custom_call.1']
    #allocation5 [shape = 's32[1]{0}', space=sflag, size = 0x4, scoped, tag = 'scoped memory for tpu_custom_call.1']
    #allocation6 [shape = 'u8[65536]{0}', space=vmem, size = 0x10000, scoped, tag = 'input window, operand 1, single buffered']
    #allocation7 [shape = 's32[1]{0}', space=sflag, size = 0x4, scoped, tag = 'scoped memory for tpu_custom_call.1']
    #allocation8 [shape = 'u8[65536]{0}', space=vmem, size = 0x10000, scoped, tag = 'output window, operand 0, single buffered']
    %7 = vsyncpa [#allocation4], 0
    %8 = vsyncpa [#allocation7], 0
    %9 = vsyncpa [#allocation5], 0
    // Predicated region
    $region2: #{tpu_custom_call.1} parent=1 // pred_check
      _
    $region3: #{tpu_custom_call.1} parent=1 // pred_check_branch
      %11 = sbr.rel (0) target = $region5
    $region4: #{tpu_custom_call.1} parent=1 // pred_region
      %s12 = sadd.s32 0, 0
      %s13 = smul.u32 32, %s12
      %s15 = ssub.s32 8192, 8192
      %16 = vsyncadd [#allocation4], %s15
      %s17 = smul.addr %s13, 2
      %s18 = smul.addr %s17, 128
      %s19 = scalar_lea.hbm %s0, %s18
      %s20 = sshll.u32 [#allocation3], 4
      %s21 = int_to_ptr.vmem [resolvable:$true] %s20
      %26 = dma.hbm_to_vmem [thread:$0]  %s19, 8192, %s21, [#allocation4], 256, 256, 16
    $region5: #{tpu_custom_call.1} parent=1 // pred_fallthru
      _
    // Predicated region
    $region6: #{tpu_custom_call.1} parent=1 // pred_check
      _
    $region7: #{tpu_custom_call.1} parent=1 // pred_check_branch
      %28 = sbr.rel (0) target = $region9
    $region8: #{tpu_custom_call.1} parent=1 // pred_region
      %s30 = ssub.s32 2048, 2048
      %31 = vsyncadd [#allocation7], %s30
      %s32 = sshll.u32 [#allocation6], 4
      %s33 = int_to_ptr.vmem [resolvable:$true] %s32
      %38 = dma.hbm_to_vmem [thread:$0]  %s1, 2048, %s33, [#allocation7], 64, 64, 4
    $region9: #{tpu_custom_call.1} parent=1 // pred_fallthru
      _
    // Predicated region
    $region10: #{tpu_custom_call.1} parent=1 // pred_check
      _
    $region11: #{tpu_custom_call.1} parent=1 // pred_check_branch
      %40 = sbr.rel (0) target = $region13
    $region12: #{tpu_custom_call.1} parent=1 // pred_region
      %41 = dma.done [#allocation4], 8192
    $region13: #{tpu_custom_call.1} parent=1 // pred_fallthru
      _
    // Predicated region
    $region14: #{tpu_custom_call.1} parent=1 // pred_check
      _
    $region15: #{tpu_custom_call.1} parent=1 // pred_check_branch
      %43 = sbr.rel (0) target = $region17
    $region16: #{tpu_custom_call.1} parent=1 // pred_region
      %44 = dma.done [#allocation7], 2048
    $region17: #{tpu_custom_call.1} parent=1 // pred_fallthru
      _
    %s45 = sadd.s32 0, 0
    %s46 = smul.u32 32, %s45
    %p48 = scmp.eq.s32.totalorder 0, 0
    %p49 = scmp.eq.s32.totalorder 0, 0
    %p50 = pnand %p48, %p49
    %p51 = pneg %p50
    // Predicated region
    $region18: #{tpu_custom_call.1} parent=1 // pred_check
      _
    $region19: #{tpu_custom_call.1} parent=1 // pred_check_branch
      %53 = sbr.rel (%p50) target = $region21
    $region20: #{tpu_custom_call.1} parent=1 // pred_region
      %54 = vst [vmem:[#allocation8] sm:$0xff] 0.0
      %55 = vst [vmem:[#allocation8 + $0x8] sm:$0xff] 0.0
      %56 = vst [vmem:[#allocation8 + $0x10] sm:$0xff] 0.0
      %57 = vst [vmem:[#allocation8 + $0x18] sm:$0xff] 0.0
      %58 = vst [vmem:[#allocation8 + $0x20] sm:$0xff] 0.0
      %59 = vst [vmem:[#allocation8 + $0x28] sm:$0xff] 0.0
      %60 = vst [vmem:[#allocation8 + $0x30] sm:$0xff] 0.0
      %61 = vst [vmem:[#allocation8 + $0x38] sm:$0xff] 0.0
      %62 = vst [vmem:[#allocation8 + $0x40] sm:$0xff] 0.0
      %63 = vst [vmem:[#allocation8 + $0x48] sm:$0xff] 0.0
      %64 = vst [vmem:[#allocation8 + $0x50] sm:$0xff] 0.0
      %65 = vst [vmem:[#allocation8 + $0x58] sm:$0xff] 0.0
      %66 = vst [vmem:[#allocation8 + $0x60] sm:$0xff] 0.0
      %67 = vst [vmem:[#allocation8 + $0x68] sm:$0xff] 0.0
      %68 = vst [vmem:[#allocation8 + $0x70] sm:$0xff] 0.0
      %69 = vst [vmem:[#allocation8 + $0x78] sm:$0xff] 0.0
    $region21: #{tpu_custom_call.1} parent=1 // pred_fallthru
      _
    // Predicated region
    $region22: #{tpu_custom_call.1} parent=1 // pred_check
      %p70 = pneg %p49
    $region23: #{tpu_custom_call.1} parent=1 // pred_check_branch
      %72 = sbr.rel (%p70) target = $region25
    $region24: #{tpu_custom_call.1} parent=1 // pred_region
      %73 = vst [vmem:[#allocation2] sm:$0xff] 0.0
      %74 = vst [vmem:[#allocation2 + $0x8] sm:$0xff] 0.0
      %75 = vst [vmem:[#allocation2 + $0x10] sm:$0xff] 0.0
      %76 = vst [vmem:[#allocation2 + $0x18] sm:$0xff] 0.0
      %77 = vst [vmem:[#allocation2 + $0x20] sm:$0xff] 0.0
      %78 = vst [vmem:[#allocation2 + $0x28] sm:$0xff] 0.0
      %79 = vst [vmem:[#allocation2 + $0x30] sm:$0xff] 0.0
      %80 = vst [vmem:[#allocation2 + $0x38] sm:$0xff] 0.0
      %81 = vst [vmem:[#allocation2 + $0x40] sm:$0xff] 0.0
      %82 = vst [vmem:[#allocation2 + $0x48] sm:$0xff] 0.0
      %83 = vst [vmem:[#allocation2 + $0x50] sm:$0xff] 0.0
      %84 = vst [vmem:[#allocation2 + $0x58] sm:$0xff] 0.0
      %85 = vst [vmem:[#allocation2 + $0x60] sm:$0xff] 0.0
      %86 = vst [vmem:[#allocation2 + $0x68] sm:$0xff] 0.0
      %87 = vst [vmem:[#allocation2 + $0x70] sm:$0xff] 0.0
      %88 = vst [vmem:[#allocation2 + $0x78] sm:$0xff] 0.0
      %89 = vst [vmem:[#allocation2 + $0x80] sm:$0xff] 0.0
      %90 = vst [vmem:[#allocation2 + $0x88] sm:$0xff] 0.0
      %91 = vst [vmem:[#allocation2 + $0x90] sm:$0xff] 0.0
      %92 = vst [vmem:[#allocation2 + $0x98] sm:$0xff] 0.0
      %93 = vst [vmem:[#allocation2 + $0xa0] sm:$0xff] 0.0
      %94 = vst [vmem:[#allocation2 + $0xa8] sm:$0xff] 0.0
      %95 = vst [vmem:[#allocation2 + $0xb0] sm:$0xff] 0.0
      %96 = vst [vmem:[#allocation2 + $0xb8] sm:$0xff] 0.0
      %97 = vst [vmem:[#allocation2 + $0xc0] sm:$0xff] 0.0
      %98 = vst [vmem:[#allocation2 + $0xc8] sm:$0xff] 0.0
      %99 = vst [vmem:[#allocation2 + $0xd0] sm:$0xff] 0.0
      %100 = vst [vmem:[#allocation2 + $0xd8] sm:$0xff] 0.0
      %101 = vst [vmem:[#allocation2 + $0xe0] sm:$0xff] 0.0
      %102 = vst [vmem:[#allocation2 + $0xe8] sm:$0xff] 0.0
      %103 = vst [vmem:[#allocation2 + $0xf0] sm:$0xff] 0.0
      %104 = vst [vmem:[#allocation2 + $0xf8] sm:$0xff] 0.0
    $region25: #{tpu_custom_call.1} parent=1 // pred_fallthru
      _
    %s105 = smul.u32 0, 256
    %s106 = sshra.s32 %s105, 3
    %s107 = sand.u32 %s105, 7
    %s108 = smul.addr %s106, 4
    %s109 = scalar_lea.vmem [#allocation6], %s108
    %v110 = vld [vmem:[%s109] sm:$0xf]
    %v111 = vld [vmem:[%s109 + $0x4] sm:$0xf]
    %v112 = vld [vmem:[%s109 + $0x8] sm:$0xf]
    %v113 = vld [vmem:[%s109 + $0xc] sm:$0xf]
    %v114 = vld [vmem:[%s109 + $0x10] sm:$0xf]
    %v115 = vld [vmem:[%s109 + $0x14] sm:$0xf]
    %v116 = vld [vmem:[%s109 + $0x18] sm:$0xf]
    %v117 = vld [vmem:[%s109 + $0x1c] sm:$0xf]
    %v118 = vld [vmem:[%s109 + $0x20] sm:$0xf]
    %v119 = vld [vmem:[%s109 + $0x24] sm:$0xf]
    %v120 = vld [vmem:[%s109 + $0x28] sm:$0xf]
    %v121 = vld [vmem:[%s109 + $0x2c] sm:$0xf]
    %v122 = vld [vmem:[%s109 + $0x30] sm:$0xf]
    %v123 = vld [vmem:[%s109 + $0x34] sm:$0xf]
    %v124 = vld [vmem:[%s109 + $0x38] sm:$0xf]
    %v125 = vld [vmem:[%s109 + $0x3c] sm:$0xf]
    %v126 = vld [vmem:[%s109 + $0x40] sm:$0xf]
    %v127 = vld [vmem:[%s109 + $0x44] sm:$0xf]
    %v128 = vld [vmem:[%s109 + $0x48] sm:$0xf]
    %v129 = vld [vmem:[%s109 + $0x4c] sm:$0xf]
    %v130 = vld [vmem:[%s109 + $0x50] sm:$0xf]
    %v131 = vld [vmem:[%s109 + $0x54] sm:$0xf]
    %v132 = vld [vmem:[%s109 + $0x58] sm:$0xf]
    %v133 = vld [vmem:[%s109 + $0x5c] sm:$0xf]
    %v134 = vld [vmem:[%s109 + $0x60] sm:$0xf]
    %v135 = vld [vmem:[%s109 + $0x64] sm:$0xf]
    %v136 = vld [vmem:[%s109 + $0x68] sm:$0xf]
    %v137 = vld [vmem:[%s109 + $0x6c] sm:$0xf]
    %v138 = vld [vmem:[%s109 + $0x70] sm:$0xf]
    %v139 = vld [vmem:[%s109 + $0x74] sm:$0xf]
    %v140 = vld [vmem:[%s109 + $0x78] sm:$0xf]
    %v141 = vld [vmem:[%s109 + $0x7c] sm:$0xf]
    %v142 = vld [vmem:[#allocation3] sm:$0xff]
    %v143 = vld [vmem:[#allocation3 + $0x8] sm:$0xff]
    %v144 = vld [vmem:[#allocation3 + $0x10] sm:$0xff]
    %v145 = vld [vmem:[#allocation3 + $0x18] sm:$0xff]
    %v146 = vld [vmem:[#allocation3 + $0x20] sm:$0xff]
    %v147 = vld [vmem:[#allocation3 + $0x28] sm:$0xff]
    %v148 = vld [vmem:[#allocation3 + $0x30] sm:$0xff]
    %v149 = vld [vmem:[#allocation3 + $0x38] sm:$0xff]
    %v150 = vld [vmem:[#allocation3 + $0x40] sm:$0xff]
    %v151 = vld [vmem:[#allocation3 + $0x48] sm:$0xff]
    %v152 = vld [vmem:[#allocation3 + $0x50] sm:$0xff]
    %v153 = vld [vmem:[#allocation3 + $0x58] sm:$0xff]
    %v154 = vld [vmem:[#allocation3 + $0x60] sm:$0xff]
    %v155 = vld [vmem:[#allocation3 + $0x68] sm:$0xff]
    %v156 = vld [vmem:[#allocation3 + $0x70] sm:$0xff]
    %v157 = vld [vmem:[#allocation3 + $0x78] sm:$0xff]
    %v158 = vld [vmem:[#allocation3 + $0x80] sm:$0xff]
    %v159 = vld [vmem:[#allocation3 + $0x88] sm:$0xff]
    %v160 = vld [vmem:[#allocation3 + $0x90] sm:$0xff]
    %v161 = vld [vmem:[#allocation3 + $0x98] sm:$0xff]
    %v162 = vld [vmem:[#allocation3 + $0xa0] sm:$0xff]
    %v163 = vld [vmem:[#allocation3 + $0xa8] sm:$0xff]
    %v164 = vld [vmem:[#allocation3 + $0xb0] sm:$0xff]
    %v165 = vld [vmem:[#allocation3 + $0xb8] sm:$0xff]
    %v166 = vld [vmem:[#allocation3 + $0xc0] sm:$0xff]
    %v167 = vld [vmem:[#allocation3 + $0xc8] sm:$0xff]
    %v168 = vld [vmem:[#allocation3 + $0xd0] sm:$0xff]
    %v169 = vld [vmem:[#allocation3 + $0xd8] sm:$0xff]
    %v170 = vld [vmem:[#allocation3 + $0xe0] sm:$0xff]
    %v171 = vld [vmem:[#allocation3 + $0xe8] sm:$0xff]
    %v172 = vld [vmem:[#allocation3 + $0xf0] sm:$0xff]
    %v173 = vld [vmem:[#allocation3 + $0xf8] sm:$0xff]
    %v174 = vld [vmem:[#allocation3 + $0x100] sm:$0xff]
    %v175 = vld [vmem:[#allocation3 + $0x108] sm:$0xff]
    %v176 = vld [vmem:[#allocation3 + $0x110] sm:$0xff]
    %v177 = vld [vmem:[#allocation3 + $0x118] sm:$0xff]
    %v178 = vld [vmem:[#allocation3 + $0x120] sm:$0xff]
    %v179 = vld [vmem:[#allocation3 + $0x128] sm:$0xff]
    %v180 = vld [vmem:[#allocation3 + $0x130] sm:$0xff]
    %v181 = vld [vmem:[#allocation3 + $0x138] sm:$0xff]
    %v182 = vld [vmem:[#allocation3 + $0x140] sm:$0xff]
    %v183 = vld [vmem:[#allocation3 + $0x148] sm:$0xff]
    %v184 = vld [vmem:[#allocation3 + $0x150] sm:$0xff]
    %v185 = vld [vmem:[#allocation3 + $0x158] sm:$0xff]
    %v186 = vld [vmem:[#allocation3 + $0x160] sm:$0xff]
    %v187 = vld [vmem:[#allocation3 + $0x168] sm:$0xff]
    %v188 = vld [vmem:[#allocation3 + $0x170] sm:$0xff]
    %v189 = vld [vmem:[#allocation3 + $0x178] sm:$0xff]
    %v190 = vld [vmem:[#allocation3 + $0x180] sm:$0xff]
    %v191 = vld [vmem:[#allocation3 + $0x188] sm:$0xff]
    %v192 = vld [vmem:[#allocation3 + $0x190] sm:$0xff]
    %v193 = vld [vmem:[#allocation3 + $0x198] sm:$0xff]
    %v194 = vld [vmem:[#allocation3 + $0x1a0] sm:$0xff]
    %v195 = vld [vmem:[#allocation3 + $0x1a8] sm:$0xff]
    %v196 = vld [vmem:[#allocation3 + $0x1b0] sm:$0xff]
    %v197 = vld [vmem:[#allocation3 + $0x1b8] sm:$0xff]
    %v198 = vld [vmem:[#allocation3 + $0x1c0] sm:$0xff]
    %v199 = vld [vmem:[#allocation3 + $0x1c8] sm:$0xff]
    %v200 = vld [vmem:[#allocation3 + $0x1d0] sm:$0xff]
    %v201 = vld [vmem:[#allocation3 + $0x1d8] sm:$0xff]
    %v202 = vld [vmem:[#allocation3 + $0x1e0] sm:$0xff]
    %v203 = vld [vmem:[#allocation3 + $0x1e8] sm:$0xff]
    %v204 = vld [vmem:[#allocation3 + $0x1f0] sm:$0xff]
    %v205 = vld [vmem:[#allocation3 + $0x1f8] sm:$0xff]
    %v206 = vpack.c.bf16 %v144, %v142
    %v207 = vpack.c.bf16 %v145, %v143
    %v208 = vpack.c.bf16 %v148, %v146
    %v209 = vpack.c.bf16 %v149, %v147
    %v210 = vpack.c.bf16 %v152, %v150
    %v211 = vpack.c.bf16 %v153, %v151
    %v212 = vpack.c.bf16 %v156, %v154
    %v213 = vpack.c.bf16 %v157, %v155
    %v214 = vpack.c.bf16 %v160, %v158
    %v215 = vpack.c.bf16 %v161, %v159
    %v216 = vpack.c.bf16 %v164, %v162
    %v217 = vpack.c.bf16 %v165, %v163
    %v218 = vpack.c.bf16 %v168, %v166
    %v219 = vpack.c.bf16 %v169, %v167
    %v220 = vpack.c.bf16 %v172, %v170
    %v221 = vpack.c.bf16 %v173, %v171
    %v222 = vpack.c.bf16 %v176, %v174
    %v223 = vpack.c.bf16 %v177, %v175
    %v224 = vpack.c.bf16 %v180, %v178
    %v225 = vpack.c.bf16 %v181, %v179
    %v226 = vpack.c.bf16 %v184, %v182
    %v227 = vpack.c.bf16 %v185, %v183
    %v228 = vpack.c.bf16 %v188, %v186
    %v229 = vpack.c.bf16 %v189, %v187
    %v230 = vpack.c.bf16 %v192, %v190
    %v231 = vpack.c.bf16 %v193, %v191
    %v232 = vpack.c.bf16 %v196, %v194
    %v233 = vpack.c.bf16 %v197, %v195
    %v234 = vpack.c.bf16 %v200, %v198
    %v235 = vpack.c.bf16 %v201, %v199
    %v236 = vpack.c.bf16 %v204, %v202
    %v237 = vpack.c.bf16 %v205, %v203
    %v238 = vld [vmem:[#allocation2] sm:$0xff]
    %v239 = vld [vmem:[#allocation2 + $0x8] sm:$0xff]
    %v240 = vld [vmem:[#allocation2 + $0x10] sm:$0xff]
    %v241 = vld [vmem:[#allocation2 + $0x18] sm:$0xff]
    %v242 = vld [vmem:[#allocation2 + $0x20] sm:$0xff]
    %v243 = vld [vmem:[#allocation2 + $0x28] sm:$0xff]
    %v244 = vld [vmem:[#allocation2 + $0x30] sm:$0xff]
    %v245 = vld [vmem:[#allocation2 + $0x38] sm:$0xff]
    %v246 = vld [vmem:[#allocation2 + $0x40] sm:$0xff]
    %v247 = vld [vmem:[#allocation2 + $0x48] sm:$0xff]
    %v248 = vld [vmem:[#allocation2 + $0x50] sm:$0xff]
    %v249 = vld [vmem:[#allocation2 + $0x58] sm:$0xff]
    %v250 = vld [vmem:[#allocation2 + $0x60] sm:$0xff]
    %v251 = vld [vmem:[#allocation2 + $0x68] sm:$0xff]
    %v252 = vld [vmem:[#allocation2 + $0x70] sm:$0xff]
    %v253 = vld [vmem:[#allocation2 + $0x78] sm:$0xff]
    %v254 = vld [vmem:[#allocation2 + $0x80] sm:$0xff]
    %v255 = vld [vmem:[#allocation2 + $0x88] sm:$0xff]
    %v256 = vld [vmem:[#allocation2 + $0x90] sm:$0xff]
    %v257 = vld [vmem:[#allocation2 + $0x98] sm:$0xff]
    %v258 = vld [vmem:[#allocation2 + $0xa0] sm:$0xff]
    %v259 = vld [vmem:[#allocation2 + $0xa8] sm:$0xff]
    %v260 = vld [vmem:[#allocation2 + $0xb0] sm:$0xff]
    %v261 = vld [vmem:[#allocation2 + $0xb8] sm:$0xff]
    %v262 = vld [vmem:[#allocation2 + $0xc0] sm:$0xff]
    %v263 = vld [vmem:[#allocation2 + $0xc8] sm:$0xff]
    %v264 = vld [vmem:[#allocation2 + $0xd0] sm:$0xff]
    %v265 = vld [vmem:[#allocation2 + $0xd8] sm:$0xff]
    %v266 = vld [vmem:[#allocation2 + $0xe0] sm:$0xff]
    %v267 = vld [vmem:[#allocation2 + $0xe8] sm:$0xff]
    %v268 = vld [vmem:[#allocation2 + $0xf0] sm:$0xff]
    %v269 = vld [vmem:[#allocation2 + $0xf8] sm:$0xff]
    %v302 = vunpack.c.l.b16 %v110
    %v303 = vunpack.c.l.b16 %v111
    %v304 = vunpack.c.l.b16 %v112
    %v305 = vunpack.c.l.b16 %v113
    %v306 = vunpack.c.l.b16 %v114
    %v307 = vunpack.c.l.b16 %v115
    %v308 = vunpack.c.l.b16 %v116
    %v309 = vunpack.c.l.b16 %v117
    %v310 = vunpack.c.l.b16 %v118
    %v311 = vunpack.c.l.b16 %v119
    %v312 = vunpack.c.l.b16 %v120
    %v313 = vunpack.c.l.b16 %v121
    %v314 = vunpack.c.l.b16 %v122
    %v315 = vunpack.c.l.b16 %v123
    %v316 = vunpack.c.l.b16 %v124
    %v317 = vunpack.c.l.b16 %v125
    %v318 = vunpack.c.l.b16 %v126
    %v319 = vunpack.c.l.b16 %v127
    %v320 = vunpack.c.l.b16 %v128
    %v321 = vunpack.c.l.b16 %v129
    %v322 = vunpack.c.l.b16 %v130
    %v323 = vunpack.c.l.b16 %v131
    %v324 = vunpack.c.l.b16 %v132
    %v325 = vunpack.c.l.b16 %v133
    %v326 = vunpack.c.l.b16 %v134
    %v327 = vunpack.c.l.b16 %v135
    %v328 = vunpack.c.l.b16 %v136
    %v329 = vunpack.c.l.b16 %v137
    %v330 = vunpack.c.l.b16 %v138
    %v331 = vunpack.c.l.b16 %v139
    %v332 = vunpack.c.l.b16 %v140
    %v333 = vunpack.c.l.b16 %v141
    %v334 = vpack.c.b16 %v303, %v302
    %v335 = vpack.c.b16 %v305, %v304
    %v336 = vpack.c.b16 %v307, %v306
    %v337 = vpack.c.b16 %v309, %v308
    %v338 = vpack.c.b16 %v311, %v310
    %v339 = vpack.c.b16 %v313, %v312
    %v340 = vpack.c.b16 %v315, %v314
    %v341 = vpack.c.b16 %v317, %v316
    %v342 = vpack.c.b16 %v319, %v318
    %v343 = vpack.c.b16 %v321, %v320
    %v344 = vpack.c.b16 %v323, %v322
    %v345 = vpack.c.b16 %v325, %v324
    %v346 = vpack.c.b16 %v327, %v326
    %v347 = vpack.c.b16 %v329, %v328
    %v348 = vpack.c.b16 %v331, %v330
    %v349 = vpack.c.b16 %v333, %v332
    %366 = vmatprep.subr.bf16.mxu0 0
    %367 = vmatpush1.bf16.msra.mxu0 %v334
    %368 = vmatprep.subr.bf16.mxu0 0
    %369 = vmatpush1.bf16.msra.mxu0 %v335
    %370 = vmatprep.subr.bf16.mxu0 0
    %371 = vmatpush1.bf16.msra.mxu0 %v336
    %372 = vmatprep.subr.bf16.mxu0 0
    %373 = vmatpush1.bf16.msra.mxu0 %v337
    %374 = vmatprep.subr.bf16.mxu0 0
    %375 = vmatpush1.bf16.msra.mxu0 %v338
    %376 = vmatprep.subr.bf16.mxu0 0
    %377 = vmatpush1.bf16.msra.mxu0 %v339
    %378 = vmatprep.subr.bf16.mxu0 0
    %379 = vmatpush1.bf16.msra.mxu0 %v340
    %380 = vmatprep.subr.bf16.mxu0 0
    %381 = vmatpush1.bf16.msra.mxu0 %v341
    %382 = vmatprep.subr.bf16.mxu0 0
    %383 = vmatpush1.bf16.msra.mxu0 %v342
    %384 = vmatprep.subr.bf16.mxu0 0
    %385 = vmatpush1.bf16.msra.mxu0 %v343
    %386 = vmatprep.subr.bf16.mxu0 0
    %387 = vmatpush1.bf16.msra.mxu0 %v344
    %388 = vmatprep.subr.bf16.mxu0 0
    %389 = vmatpush1.bf16.msra.mxu0 %v345
    %390 = vmatprep.subr.bf16.mxu0 0
    %391 = vmatpush1.bf16.msra.mxu0 %v346
    %392 = vmatprep.subr.bf16.mxu0 0
    %393 = vmatpush1.bf16.msra.mxu0 %v347
    %394 = vmatprep.subr.bf16.mxu0 0
    %395 = vmatpush1.bf16.msra.mxu0 %v348
    %396 = vmatprep.subr.bf16.mxu0 0
    %397 = vmatpush1.bf16.msra.mxu0 %v349
    %398 = vmatprep.mubr.bf16.mxu0 %v207
    %399 = vmatmul.mubr.bf16.gmra.mrb[0].mxu0 %v206
    %v400 = vpop.f32.mrb[0].mxu0
    %v401 = vadd.f32 0.0, %v400
    %v402 = vpop.f32.mrb[0].mxu0
    %v403 = vpop.f32.mrb[0].mxu0
    %v404 = vadd.f32 0.0, %v403
    %v405 = vpop.f32.mrb[0].mxu0
    %406 = vmatprep.mubr.bf16.mxu0 %v209
    %407 = vmatmul.mubr.bf16.gmra.mrb[0].mxu0 %v208
    %v408 = vpop.f32.mrb[0].mxu0
    %v409 = vadd.f32 0.0, %v408
    %v410 = vpop.f32.mrb[0].mxu0
    %v411 = vpop.f32.mrb[0].mxu0
    %v412 = vadd.f32 0.0, %v411
    %v413 = vpop.f32.mrb[0].mxu0
    %414 = vmatprep.mubr.bf16.mxu0 %v211
    %415 = vmatmul.mubr.bf16.gmra.mrb[0].mxu0 %v210
    %v416 = vpop.f32.mrb[0].mxu0
    %v417 = vadd.f32 0.0, %v416
    %v418 = vpop.f32.mrb[0].mxu0
    %v419 = vpop.f32.mrb[0].mxu0
    %v420 = vadd.f32 0.0, %v419
    %v421 = vpop.f32.mrb[0].mxu0
    %422 = vmatprep.mubr.bf16.mxu0 %v213
    %423 = vmatmul.mubr.bf16.gmra.mrb[0].mxu0 %v212
    %v424 = vpop.f32.mrb[0].mxu0
    %v425 = vadd.f32 0.0, %v424
    %v426 = vpop.f32.mrb[0].mxu0
    %v427 = vpop.f32.mrb[0].mxu0
    %v428 = vadd.f32 0.0, %v427
    %v429 = vpop.f32.mrb[0].mxu0
    %430 = vmatprep.mubr.bf16.mxu0 %v215
    %431 = vmatmul.mubr.bf16.gmra.mrb[0].mxu0 %v214
    %v432 = vpop.f32.mrb[0].mxu0
    %v433 = vadd.f32 0.0, %v432
    %v434 = vpop.f32.mrb[0].mxu0
    %v435 = vpop.f32.mrb[0].mxu0
    %v436 = vadd.f32 0.0, %v435
    %v437 = vpop.f32.mrb[0].mxu0
    %438 = vmatprep.mubr.bf16.mxu0 %v217
    %439 = vmatmul.mubr.bf16.gmra.mrb[0].mxu0 %v216
    %v440 = vpop.f32.mrb[0].mxu0
    %v441 = vadd.f32 0.0, %v440
    %v442 = vpop.f32.mrb[0].mxu0
    %v443 = vpop.f32.mrb[0].mxu0
    %v444 = vadd.f32 0.0, %v443
    %v445 = vpop.f32.mrb[0].mxu0
    %446 = vmatprep.mubr.bf16.mxu0 %v219
    %447 = vmatmul.mubr.bf16.gmra.mrb[0].mxu0 %v218
    %v448 = vpop.f32.mrb[0].mxu0
    %v449 = vadd.f32 0.0, %v448
    %v450 = vpop.f32.mrb[0].mxu0
    %v451 = vpop.f32.mrb[0].mxu0
    %v452 = vadd.f32 0.0, %v451
    %v453 = vpop.f32.mrb[0].mxu0
    %454 = vmatprep.mubr.bf16.mxu0 %v221
    %455 = vmatmul.mubr.bf16.gmra.mrb[0].mxu0 %v220
    %v456 = vpop.f32.mrb[0].mxu0
    %v457 = vadd.f32 0.0, %v456
    %v458 = vpop.f32.mrb[0].mxu0
    %v459 = vpop.f32.mrb[0].mxu0
    %v460 = vadd.f32 0.0, %v459
    %v461 = vpop.f32.mrb[0].mxu0
    %462 = vmatprep.mubr.bf16.mxu0 %v223
    %463 = vmatmul.mubr.bf16.gmra.mrb[0].mxu0 %v222
    %v464 = vpop.f32.mrb[0].mxu0
    %v465 = vadd.f32 0.0, %v464
    %v466 = vpop.f32.mrb[0].mxu0
    %v467 = vpop.f32.mrb[0].mxu0
    %v468 = vadd.f32 0.0, %v467
    %v469 = vpop.f32.mrb[0].mxu0
    %470 = vmatprep.mubr.bf16.mxu0 %v225
    %471 = vmatmul.mubr.bf16.gmra.mrb[0].mxu0 %v224
    %v472 = vpop.f32.mrb[0].mxu0
    %v473 = vadd.f32 0.0, %v472
    %v474 = vpop.f32.mrb[0].mxu0
    %v475 = vpop.f32.mrb[0].mxu0
    %v476 = vadd.f32 0.0, %v475
    %v477 = vpop.f32.mrb[0].mxu0
    %478 = vmatprep.mubr.bf16.mxu0 %v227
    %479 = vmatmul.mubr.bf16.gmra.mrb[0].mxu0 %v226
    %v480 = vpop.f32.mrb[0].mxu0
    %v481 = vadd.f32 0.0, %v480
    %v482 = vpop.f32.mrb[0].mxu0
    %v483 = vpop.f32.mrb[0].mxu0
    %v484 = vadd.f32 0.0, %v483
    %v485 = vpop.f32.mrb[0].mxu0
    %486 = vmatprep.mubr.bf16.mxu0 %v229
    %487 = vmatmul.mubr.bf16.gmra.mrb[0].mxu0 %v228
    %v488 = vpop.f32.mrb[0].mxu0
    %v489 = vadd.f32 0.0, %v488
    %v490 = vpop.f32.mrb[0].mxu0
    %v491 = vpop.f32.mrb[0].mxu0
    %v492 = vadd.f32 0.0, %v491
    %v493 = vpop.f32.mrb[0].mxu0
    %494 = vmatprep.mubr.bf16.mxu0 %v231
    %495 = vmatmul.mubr.bf16.gmra.mrb[0].mxu0 %v230
    %v496 = vpop.f32.mrb[0].mxu0
    %v497 = vadd.f32 0.0, %v496
    %v498 = vpop.f32.mrb[0].mxu0
    %v499 = vpop.f32.mrb[0].mxu0
    %v500 = vadd.f32 0.0, %v499
    %v501 = vpop.f32.mrb[0].mxu0
    %502 = vmatprep.mubr.bf16.mxu0 %v233
    %503 = vmatmul.mubr.bf16.gmra.mrb[0].mxu0 %v232
    %v504 = vpop.f32.mrb[0].mxu0
    %v505 = vadd.f32 0.0, %v504
    %v506 = vpop.f32.mrb[0].mxu0
    %v507 = vpop.f32.mrb[0].mxu0
    %v508 = vadd.f32 0.0, %v507
    %v509 = vpop.f32.mrb[0].mxu0
    %510 = vmatprep.mubr.bf16.mxu0 %v235
    %511 = vmatmul.mubr.bf16.gmra.mrb[0].mxu0 %v234
    %v512 = vpop.f32.mrb[0].mxu0
    %v513 = vadd.f32 0.0, %v512
    %v514 = vpop.f32.mrb[0].mxu0
    %v515 = vpop.f32.mrb[0].mxu0
    %v516 = vadd.f32 0.0, %v515
    %v517 = vpop.f32.mrb[0].mxu0
    %518 = vmatprep.mubr.bf16.mxu0 %v237
    %519 = vmatmul.mubr.bf16.gmra.mrb[0].mxu0 %v236
    %v520 = vpop.f32.mrb[0].mxu0
    %v521 = vadd.f32 0.0, %v520
    %v522 = vpop.f32.mrb[0].mxu0
    %v523 = vpop.f32.mrb[0].mxu0
    %v524 = vadd.f32 0.0, %v523
    %v525 = vpop.f32.mrb[0].mxu0
    %526 = vdwg.mxu0
    %v527 = vadd.f32 %v238, %v401
    %v528 = vadd.f32 %v239, %v404
    %v529 = vadd.f32 %v240, %v409
    %v530 = vadd.f32 %v241, %v412
    %v531 = vadd.f32 %v242, %v417
    %v532 = vadd.f32 %v243, %v420
    %v533 = vadd.f32 %v244, %v425
    %v534 = vadd.f32 %v245, %v428
    %v535 = vadd.f32 %v246, %v433
    %v536 = vadd.f32 %v247, %v436
    %v537 = vadd.f32 %v248, %v441
    %v538 = vadd.f32 %v249, %v444
    %v539 = vadd.f32 %v250, %v449
    %v540 = vadd.f32 %v251, %v452
    %v541 = vadd.f32 %v252, %v457
    %v542 = vadd.f32 %v253, %v460
    %v543 = vadd.f32 %v254, %v465
    %v544 = vadd.f32 %v255, %v468
    %v545 = vadd.f32 %v256, %v473
    %v546 = vadd.f32 %v257, %v476
    %v547 = vadd.f32 %v258, %v481
    %v548 = vadd.f32 %v259, %v484
    %v549 = vadd.f32 %v260, %v489
    %v550 = vadd.f32 %v261, %v492
    %v551 = vadd.f32 %v262, %v497
    %v552 = vadd.f32 %v263, %v500
    %v553 = vadd.f32 %v264, %v505
    %v554 = vadd.f32 %v265, %v508
    %v555 = vadd.f32 %v266, %v513
    %v556 = vadd.f32 %v267, %v516
    %v557 = vadd.f32 %v268, %v521
    %v558 = vadd.f32 %v269, %v524
    %559 = vst [vmem:[#allocation2] sm:$0xff] %v527
    %560 = vst [vmem:[#allocation2 + $0x8] sm:$0xff] %v528
    %561 = vst [vmem:[#allocation2 + $0x10] sm:$0xff] %v529
    %562 = vst [vmem:[#allocation2 + $0x18] sm:$0xff] %v530
    %563 = vst [vmem:[#allocation2 + $0x20] sm:$0xff] %v531
    %564 = vst [vmem:[#allocation2 + $0x28] sm:$0xff] %v532
    %565 = vst [vmem:[#allocation2 + $0x30] sm:$0xff] %v533
    %566 = vst [vmem:[#allocation2 + $0x38] sm:$0xff] %v534
    %567 = vst [vmem:[#allocation2 + $0x40] sm:$0xff] %v535
    %568 = vst [vmem:[#allocation2 + $0x48] sm:$0xff] %v536
    %569 = vst [vmem:[#allocation2 + $0x50] sm:$0xff] %v537
    %570 = vst [vmem:[#allocation2 + $0x58] sm:$0xff] %v538
    %571 = vst [vmem:[#allocation2 + $0x60] sm:$0xff] %v539
    %572 = vst [vmem:[#allocation2 + $0x68] sm:$0xff] %v540
    %573 = vst [vmem:[#allocation2 + $0x70] sm:$0xff] %v541
    %574 = vst [vmem:[#allocation2 + $0x78] sm:$0xff] %v542
    %575 = vst [vmem:[#allocation2 + $0x80] sm:$0xff] %v543
    %576 = vst [vmem:[#allocation2 + $0x88] sm:$0xff] %v544
    %577 = vst [vmem:[#allocation2 + $0x90] sm:$0xff] %v545
    %578 = vst [vmem:[#allocation2 + $0x98] sm:$0xff] %v546
    %579 = vst [vmem:[#allocation2 + $0xa0] sm:$0xff] %v547
    %580 = vst [vmem:[#allocation2 + $0xa8] sm:$0xff] %v548
    %581 = vst [vmem:[#allocation2 + $0xb0] sm:$0xff] %v549
    %582 = vst [vmem:[#allocation2 + $0xb8] sm:$0xff] %v550
    %583 = vst [vmem:[#allocation2 + $0xc0] sm:$0xff] %v551
    %584 = vst [vmem:[#allocation2 + $0xc8] sm:$0xff] %v552
    %585 = vst [vmem:[#allocation2 + $0xd0] sm:$0xff] %v553
    %586 = vst [vmem:[#allocation2 + $0xd8] sm:$0xff] %v554
    %587 = vst [vmem:[#allocation2 + $0xe0] sm:$0xff] %v555
    %588 = vst [vmem:[#allocation2 + $0xe8] sm:$0xff] %v556
    %589 = vst [vmem:[#allocation2 + $0xf0] sm:$0xff] %v557
    %590 = vst [vmem:[#allocation2 + $0xf8] sm:$0xff] %v558
    // Predicated region
    $region26: #{tpu_custom_call.1} parent=1 // pred_check
      %p591 = pneg %p49
    $region27: #{tpu_custom_call.1} parent=1 // pred_check_branch
      %593 = sbr.rel (%p591) target = $region29
    $region28: #{tpu_custom_call.1} parent=1 // pred_region
      %s594 = sadd.s32 0, 0
      %s595 = smul.u32 %s594, 256
      %s596 = sshra.s32 %s595, 3
      %s597 = sand.u32 %s595, 7
      %s598 = smul.addr %s596, 4
      %s599 = scalar_lea.vmem [#allocation6], %s598
      %v600 = vld [vmem:[%s599] sm:$0xf]
      %v601 = vld [vmem:[%s599 + $0x4] sm:$0xf]
      %v602 = vld [vmem:[%s599 + $0x8] sm:$0xf]
      %v603 = vld [vmem:[%s599 + $0xc] sm:$0xf]
      %v604 = vld [vmem:[%s599 + $0x10] sm:$0xf]
      %v605 = vld [vmem:[%s599 + $0x14] sm:$0xf]
      %v606 = vld [vmem:[%s599 + $0x18] sm:$0xf]
      %v607 = vld [vmem:[%s599 + $0x1c] sm:$0xf]
      %v608 = vld [vmem:[%s599 + $0x20] sm:$0xf]
      %v609 = vld [vmem:[%s599 + $0x24] sm:$0xf]
      %v610 = vld [vmem:[%s599 + $0x28] sm:$0xf]
      %v611 = vld [vmem:[%s599 + $0x2c] sm:$0xf]
      %v612 = vld [vmem:[%s599 + $0x30] sm:$0xf]
      %v613 = vld [vmem:[%s599 + $0x34] sm:$0xf]
      %v614 = vld [vmem:[%s599 + $0x38] sm:$0xf]
      %v615 = vld [vmem:[%s599 + $0x3c] sm:$0xf]
      %v616 = vld [vmem:[%s599 + $0x40] sm:$0xf]
      %v617 = vld [vmem:[%s599 + $0x44] sm:$0xf]
      %v618 = vld [vmem:[%s599 + $0x48] sm:$0xf]
      %v619 = vld [vmem:[%s599 + $0x4c] sm:$0xf]
      %v620 = vld [vmem:[%s599 + $0x50] sm:$0xf]
      %v621 = vld [vmem:[%s599 + $0x54] sm:$0xf]
      %v622 = vld [vmem:[%s599 + $0x58] sm:$0xf]
      %v623 = vld [vmem:[%s599 + $0x5c] sm:$0xf]
      %v624 = vld [vmem:[%s599 + $0x60] sm:$0xf]
      %v625 = vld [vmem:[%s599 + $0x64] sm:$0xf]
      %v626 = vld [vmem:[%s599 + $0x68] sm:$0xf]
      %v627 = vld [vmem:[%s599 + $0x6c] sm:$0xf]
      %v628 = vld [vmem:[%s599 + $0x70] sm:$0xf]
      %v629 = vld [vmem:[%s599 + $0x74] sm:$0xf]
      %v630 = vld [vmem:[%s599 + $0x78] sm:$0xf]
      %v631 = vld [vmem:[%s599 + $0x7c] sm:$0xf]
      %v632 = vunpack.c.l.bf16 %v600
      %v633 = vunpack.c.l.bf16 %v601
      %v634 = vunpack.c.l.bf16 %v602
      %v635 = vunpack.c.l.bf16 %v603
      %v636 = vunpack.c.l.bf16 %v604
      %v637 = vunpack.c.l.bf16 %v605
      %v638 = vunpack.c.l.bf16 %v606
      %v639 = vunpack.c.l.bf16 %v607
      %v640 = vunpack.c.l.bf16 %v608
      %v641 = vunpack.c.l.bf16 %v609
      %v642 = vunpack.c.l.bf16 %v610
      %v643 = vunpack.c.l.bf16 %v611
      %v644 = vunpack.c.l.bf16 %v612
      %v645 = vunpack.c.l.bf16 %v613
      %v646 = vunpack.c.l.bf16 %v614
      %v647 = vunpack.c.l.bf16 %v615
      %v648 = vunpack.c.l.bf16 %v616
      %v649 = vunpack.c.l.bf16 %v617
      %v650 = vunpack.c.l.bf16 %v618
      %v651 = vunpack.c.l.bf16 %v619
      %v652 = vunpack.c.l.bf16 %v620
      %v653 = vunpack.c.l.bf16 %v621
      %v654 = vunpack.c.l.bf16 %v622
      %v655 = vunpack.c.l.bf16 %v623
      %v656 = vunpack.c.l.bf16 %v624
      %v657 = vunpack.c.l.bf16 %v625
      %v658 = vunpack.c.l.bf16 %v626
      %v659 = vunpack.c.l.bf16 %v627
      %v660 = vunpack.c.l.bf16 %v628
      %v661 = vunpack.c.l.bf16 %v629
      %v662 = vunpack.c.l.bf16 %v630
      %v663 = vunpack.c.l.bf16 %v631
      %v664 = vld [vmem:[#allocation8] sm:$0xff]
      %v665 = vld [vmem:[#allocation8 + $0x8] sm:$0xff]
      %v666 = vld [vmem:[#allocation8 + $0x10] sm:$0xff]
      %v667 = vld [vmem:[#allocation8 + $0x18] sm:$0xff]
      %v668 = vld [vmem:[#allocation8 + $0x20] sm:$0xff]
      %v669 = vld [vmem:[#allocation8 + $0x28] sm:$0xff]
      %v670 = vld [vmem:[#allocation8 + $0x30] sm:$0xff]
      %v671 = vld [vmem:[#allocation8 + $0x38] sm:$0xff]
      %v672 = vld [vmem:[#allocation8 + $0x40] sm:$0xff]
      %v673 = vld [vmem:[#allocation8 + $0x48] sm:$0xff]
      %v674 = vld [vmem:[#allocation8 + $0x50] sm:$0xff]
      %v675 = vld [vmem:[#allocation8 + $0x58] sm:$0xff]
      %v676 = vld [vmem:[#allocation8 + $0x60] sm:$0xff]
      %v677 = vld [vmem:[#allocation8 + $0x68] sm:$0xff]
      %v678 = vld [vmem:[#allocation8 + $0x70] sm:$0xff]
      %v679 = vld [vmem:[#allocation8 + $0x78] sm:$0xff]
      %v680 = vld [vmem:[#allocation2] sm:$0xff]
      %v681 = vld [vmem:[#allocation2 + $0x8] sm:$0xff]
      %v682 = vld [vmem:[#allocation2 + $0x10] sm:$0xff]
      %v683 = vld [vmem:[#allocation2 + $0x18] sm:$0xff]
      %v684 = vld [vmem:[#allocation2 + $0x20] sm:$0xff]
      %v685 = vld [vmem:[#allocation2 + $0x28] sm:$0xff]
      %v686 = vld [vmem:[#allocation2 + $0x30] sm:$0xff]
      %v687 = vld [vmem:[#allocation2 + $0x38] sm:$0xff]
      %v688 = vld [vmem:[#allocation2 + $0x40] sm:$0xff]
      %v689 = vld [vmem:[#allocation2 + $0x48] sm:$0xff]
      %v690 = vld [vmem:[#allocation2 + $0x50] sm:$0xff]
      %v691 = vld [vmem:[#allocation2 + $0x58] sm:$0xff]
      %v692 = vld [vmem:[#allocation2 + $0x60] sm:$0xff]
      %v693 = vld [vmem:[#allocation2 + $0x68] sm:$0xff]
      %v694 = vld [vmem:[#allocation2 + $0x70] sm:$0xff]
      %v695 = vld [vmem:[#allocation2 + $0x78] sm:$0xff]
      %v696 = vld [vmem:[#allocation2 + $0x80] sm:$0xff]
      %v697 = vld [vmem:[#allocation2 + $0x88] sm:$0xff]
      %v698 = vld [vmem:[#allocation2 + $0x90] sm:$0xff]
      %v699 = vld [vmem:[#allocation2 + $0x98] sm:$0xff]
      %v700 = vld [vmem:[#allocation2 + $0xa0] sm:$0xff]
      %v701 = vld [vmem:[#allocation2 + $0xa8] sm:$0xff]
      %v702 = vld [vmem:[#allocation2 + $0xb0] sm:$0xff]
      %v703 = vld [vmem:[#allocation2 + $0xb8] sm:$0xff]
      %v704 = vld [vmem:[#allocation2 + $0xc0] sm:$0xff]
      %v705 = vld [vmem:[#allocation2 + $0xc8] sm:$0xff]
      %v706 = vld [vmem:[#allocation2 + $0xd0] sm:$0xff]
      %v707 = vld [vmem:[#allocation2 + $0xd8] sm:$0xff]
      %v708 = vld [vmem:[#allocation2 + $0xe0] sm:$0xff]
      %v709 = vld [vmem:[#allocation2 + $0xe8] sm:$0xff]
      %v710 = vld [vmem:[#allocation2 + $0xf0] sm:$0xff]
      %v711 = vld [vmem:[#allocation2 + $0xf8] sm:$0xff]
      %712 = vxpose.xlu0.b32.start [1/16] %v632, 128
      %713 = vxpose.xlu0.b32.cont [2/16] %v633, 128
      %714 = vxpose.xlu0.b32.cont [3/16] %v634, 128
      %715 = vxpose.xlu0.b32.cont [4/16] %v635, 128
      %716 = vxpose.xlu0.b32.cont [5/16] %v636, 128
      %717 = vxpose.xlu0.b32.cont [6/16] %v637, 128
      %718 = vxpose.xlu0.b32.cont [7/16] %v638, 128
      %719 = vxpose.xlu0.b32.cont [8/16] %v639, 128
      %720 = vxpose.xlu0.b32.cont [9/16] %v640, 128
      %721 = vxpose.xlu0.b32.cont [10/16] %v641, 128
      %722 = vxpose.xlu0.b32.cont [11/16] %v642, 128
      %723 = vxpose.xlu0.b32.cont [12/16] %v643, 128
      %724 = vxpose.xlu0.b32.cont [13/16] %v644, 128
      %725 = vxpose.xlu0.b32.cont [14/16] %v645, 128
      %726 = vxpose.xlu0.b32.cont [15/16] %v646, 128
      %727 = vxpose.xlu0.b32.end [16/16] %v647, 128
      %v728 = vpop.trf.xlu0
      %v729 = vpop.trf.xlu0
      %v730 = vpop.trf.xlu0
      %v731 = vpop.trf.xlu0
      %v732 = vpop.trf.xlu0
      %v733 = vpop.trf.xlu0
      %v734 = vpop.trf.xlu0
      %v735 = vpop.trf.xlu0
      %v736 = vpop.trf.xlu0
      %v737 = vpop.trf.xlu0
      %v738 = vpop.trf.xlu0
      %v739 = vpop.trf.xlu0
      %v740 = vpop.trf.xlu0
      %v741 = vpop.trf.xlu0
      %v742 = vpop.trf.xlu0
      %v743 = vpop.trf.xlu0
      %744 = vxpose.xlu0.b32.start [1/16] %v648, 128
      %745 = vxpose.xlu0.b32.cont [2/16] %v649, 128
      %746 = vxpose.xlu0.b32.cont [3/16] %v650, 128
      %747 = vxpose.xlu0.b32.cont [4/16] %v651, 128
      %748 = vxpose.xlu0.b32.cont [5/16] %v652, 128
      %749 = vxpose.xlu0.b32.cont [6/16] %v653, 128
      %750 = vxpose.xlu0.b32.cont [7/16] %v654, 128
      %751 = vxpose.xlu0.b32.cont [8/16] %v655, 128
      %752 = vxpose.xlu0.b32.cont [9/16] %v656, 128
      %753 = vxpose.xlu0.b32.cont [10/16] %v657, 128
      %754 = vxpose.xlu0.b32.cont [11/16] %v658, 128
      %755 = vxpose.xlu0.b32.cont [12/16] %v659, 128
      %756 = vxpose.xlu0.b32.cont [13/16] %v660, 128
      %757 = vxpose.xlu0.b32.cont [14/16] %v661, 128
      %758 = vxpose.xlu0.b32.cont [15/16] %v662, 128
      %759 = vxpose.xlu0.b32.end [16/16] %v663, 128
      %v760 = vpop.trf.xlu0
      %v761 = vpop.trf.xlu0
      %v762 = vpop.trf.xlu0
      %v763 = vpop.trf.xlu0
      %v764 = vpop.trf.xlu0
      %v765 = vpop.trf.xlu0
      %v766 = vpop.trf.xlu0
      %v767 = vpop.trf.xlu0
      %v768 = vpop.trf.xlu0
      %v769 = vpop.trf.xlu0
      %v770 = vpop.trf.xlu0
      %v771 = vpop.trf.xlu0
      %v772 = vpop.trf.xlu0
      %v773 = vpop.trf.xlu0
      %v774 = vpop.trf.xlu0
      %v775 = vpop.trf.xlu0
      %776 = vmatprep.subr.mxu0 0.0
      %777 = vmatpush1.msra.mxu0 %v680
      %778 = vmatprep.subr.mxu0 0.0
      %779 = vmatpush1.msra.mxu0 %v681
      %780 = vmatprep.subr.mxu0 0.0
      %781 = vmatpush1.msra.mxu0 %v682
      %782 = vmatprep.subr.mxu0 0.0
      %783 = vmatpush1.msra.mxu0 %v683
      %784 = vmatprep.subr.mxu0 0.0
      %785 = vmatpush1.msra.mxu0 %v684
      %786 = vmatprep.subr.mxu0 0.0
      %787 = vmatpush1.msra.mxu0 %v685
      %788 = vmatprep.subr.mxu0 0.0
      %789 = vmatpush1.msra.mxu0 %v686
      %790 = vmatprep.subr.mxu0 0.0
      %791 = vmatpush1.msra.mxu0 %v687
      %792 = vmatprep.subr.mxu0 0.0
      %793 = vmatpush1.msra.mxu0 %v688
      %794 = vmatprep.subr.mxu0 0.0
      %795 = vmatpush1.msra.mxu0 %v689
      %796 = vmatprep.subr.mxu0 0.0
      %797 = vmatpush1.msra.mxu0 %v690
      %798 = vmatprep.subr.mxu0 0.0
      %799 = vmatpush1.msra.mxu0 %v691
      %800 = vmatprep.subr.mxu0 0.0
      %801 = vmatpush1.msra.mxu0 %v692
      %802 = vmatprep.subr.mxu0 0.0
      %803 = vmatpush1.msra.mxu0 %v693
      %804 = vmatprep.subr.mxu0 0.0
      %805 = vmatpush1.msra.mxu0 %v694
      %806 = vmatprep.subr.mxu0 0.0
      %807 = vmatpush1.msra.mxu0 %v695
      %808 = vmatprep.subr.mxu0 0.0
      %809 = vmatpush1.msra.mxu0 %v696
      %810 = vmatprep.subr.mxu0 0.0
      %811 = vmatpush1.msra.mxu0 %v697
      %812 = vmatprep.subr.mxu0 0.0
      %813 = vmatpush1.msra.mxu0 %v698
      %814 = vmatprep.subr.mxu0 0.0
      %815 = vmatpush1.msra.mxu0 %v699
      %816 = vmatprep.subr.mxu0 0.0
      %817 = vmatpush1.msra.mxu0 %v700
      %818 = vmatprep.subr.mxu0 0.0
      %819 = vmatpush1.msra.mxu0 %v701
      %820 = vmatprep.subr.mxu0 0.0
      %821 = vmatpush1.msra.mxu0 %v702
      %822 = vmatprep.subr.mxu0 0.0
      %823 = vmatpush1.msra.mxu0 %v703
      %824 = vmatprep.subr.mxu0 0.0
      %825 = vmatpush1.msra.mxu0 %v704
      %826 = vmatprep.subr.mxu0 0.0
      %827 = vmatpush1.msra.mxu0 %v705
      %828 = vmatprep.subr.mxu0 0.0
      %829 = vmatpush1.msra.mxu0 %v706
      %830 = vmatprep.subr.mxu0 0.0
      %831 = vmatpush1.msra.mxu0 %v707
      %832 = vmatprep.subr.mxu0 0.0
      %833 = vmatpush1.msra.mxu0 %v708
      %834 = vmatprep.subr.mxu0 0.0
      %835 = vmatpush1.msra.mxu0 %v709
      %836 = vmatprep.subr.mxu0 0.0
      %837 = vmatpush1.msra.mxu0 %v710
      %838 = vmatprep.subr.mxu0 0.0
      %839 = vmatpush1.msra.mxu0 %v711
      %840 = vmatprep.mubr.f32.mxu0 %v760
      %841 = vmatmul.mubr.f32.gmra.mrb[0].mxu0 %v728
      %v842 = vpop.f32.mrb[0].mxu0
      %v843 = vadd.f32 0.0, %v842
      %v844 = vpop.f32.mrb[0].mxu0
      %845 = vmatprep.mubr.f32.mxu0 %v761
      %846 = vmatmul.mubr.f32.gmra.mrb[0].mxu0 %v729
      %v847 = vpop.f32.mrb[0].mxu0
      %v848 = vadd.f32 0.0, %v847
      %v849 = vpop.f32.mrb[0].mxu0
      %850 = vmatprep.mubr.f32.mxu0 %v762
      %851 = vmatmul.mubr.f32.gmra.mrb[0].mxu0 %v730
      %v852 = vpop.f32.mrb[0].mxu0
      %v853 = vadd.f32 0.0, %v852
      %v854 = vpop.f32.mrb[0].mxu0
      %855 = vmatprep.mubr.f32.mxu0 %v763
      %856 = vmatmul.mubr.f32.gmra.mrb[0].mxu0 %v731
      %v857 = vpop.f32.mrb[0].mxu0
      %v858 = vadd.f32 0.0, %v857
      %v859 = vpop.f32.mrb[0].mxu0
      %860 = vmatprep.mubr.f32.mxu0 %v764
      %861 = vmatmul.mubr.f32.gmra.mrb[0].mxu0 %v732
      %v862 = vpop.f32.mrb[0].mxu0
      %v863 = vadd.f32 0.0, %v862
      %v864 = vpop.f32.mrb[0].mxu0
      %865 = vmatprep.mubr.f32.mxu0 %v765
      %866 = vmatmul.mubr.f32.gmra.mrb[0].mxu0 %v733
      %v867 = vpop.f32.mrb[0].mxu0
      %v868 = vadd.f32 0.0, %v867
      %v869 = vpop.f32.mrb[0].mxu0
      %870 = vmatprep.mubr.f32.mxu0 %v766
      %871 = vmatmul.mubr.f32.gmra.mrb[0].mxu0 %v734
      %v872 = vpop.f32.mrb[0].mxu0
      %v873 = vadd.f32 0.0, %v872
      %v874 = vpop.f32.mrb[0].mxu0
      %875 = vmatprep.mubr.f32.mxu0 %v767
      %876 = vmatmul.mubr.f32.gmra.mrb[0].mxu0 %v735
      %v877 = vpop.f32.mrb[0].mxu0
      %v878 = vadd.f32 0.0, %v877
      %v879 = vpop.f32.mrb[0].mxu0
      %880 = vmatprep.mubr.f32.mxu0 %v768
      %881 = vmatmul.mubr.f32.gmra.mrb[0].mxu0 %v736
      %v882 = vpop.f32.mrb[0].mxu0
      %v883 = vadd.f32 0.0, %v882
      %v884 = vpop.f32.mrb[0].mxu0
      %885 = vmatprep.mubr.f32.mxu0 %v769
      %886 = vmatmul.mubr.f32.gmra.mrb[0].mxu0 %v737
      %v887 = vpop.f32.mrb[0].mxu0
      %v888 = vadd.f32 0.0, %v887
      %v889 = vpop.f32.mrb[0].mxu0
      %890 = vmatprep.mubr.f32.mxu0 %v770
      %891 = vmatmul.mubr.f32.gmra.mrb[0].mxu0 %v738
      %v892 = vpop.f32.mrb[0].mxu0
      %v893 = vadd.f32 0.0, %v892
      %v894 = vpop.f32.mrb[0].mxu0
      %895 = vmatprep.mubr.f32.mxu0 %v771
      %896 = vmatmul.mubr.f32.gmra.mrb[0].mxu0 %v739
      %v897 = vpop.f32.mrb[0].mxu0
      %v898 = vadd.f32 0.0, %v897
      %v899 = vpop.f32.mrb[0].mxu0
      %900 = vmatprep.mubr.f32.mxu0 %v772
      %901 = vmatmul.mubr.f32.gmra.mrb[0].mxu0 %v740
      %v902 = vpop.f32.mrb[0].mxu0
      %v903 = vadd.f32 0.0, %v902
      %v904 = vpop.f32.mrb[0].mxu0
      %905 = vmatprep.mubr.f32.mxu0 %v773
      %906 = vmatmul.mubr.f32.gmra.mrb[0].mxu0 %v741
      %v907 = vpop.f32.mrb[0].mxu0
      %v908 = vadd.f32 0.0, %v907
      %v909 = vpop.f32.mrb[0].mxu0
      %910 = vmatprep.mubr.f32.mxu0 %v774
      %911 = vmatmul.mubr.f32.gmra.mrb[0].mxu0 %v742
      %v912 = vpop.f32.mrb[0].mxu0
      %v913 = vadd.f32 0.0, %v912
      %v914 = vpop.f32.mrb[0].mxu0
      %915 = vmatprep.mubr.f32.mxu0 %v775
      %916 = vmatmul.mubr.f32.gmra.mrb[0].mxu0 %v743
      %v917 = vpop.f32.mrb[0].mxu0
      %v918 = vadd.f32 0.0, %v917
      %v919 = vpop.f32.mrb[0].mxu0
      %920 = vdwg.mxu0
      %v921 = vadd.f32 %v664, %v843
      %v922 = vadd.f32 %v665, %v848
      %v923 = vadd.f32 %v666, %v853
      %v924 = vadd.f32 %v667, %v858
      %v925 = vadd.f32 %v668, %v863
      %v926 = vadd.f32 %v669, %v868
      %v927 = vadd.f32 %v670, %v873
      %v928 = vadd.f32 %v671, %v878
      %v929 = vadd.f32 %v672, %v883
      %v930 = vadd.f32 %v673, %v888
      %v931 = vadd.f32 %v674, %v893
      %v932 = vadd.f32 %v675, %v898
      %v933 = vadd.f32 %v676, %v903
      %v934 = vadd.f32 %v677, %v908
      %v935 = vadd.f32 %v678, %v913
      %v936 = vadd.f32 %v679, %v918
      %937 = vst [vmem:[#allocation8] sm:$0xff] %v921
      %938 = vst [vmem:[#allocation8 + $0x8] sm:$0xff] %v922
      %939 = vst [vmem:[#allocation8 + $0x10] sm:$0xff] %v923
      %940 = vst [vmem:[#allocation8 + $0x18] sm:$0xff] %v924
      %941 = vst [vmem:[#allocation8 + $0x20] sm:$0xff] %v925
      %942 = vst [vmem:[#allocation8 + $0x28] sm:$0xff] %v926
      %943 = vst [vmem:[#allocation8 + $0x30] sm:$0xff] %v927
      %944 = vst [vmem:[#allocation8 + $0x38] sm:$0xff] %v928
      %945 = vst [vmem:[#allocation8 + $0x40] sm:$0xff] %v929
      %946 = vst [vmem:[#allocation8 + $0x48] sm:$0xff] %v930
      %947 = vst [vmem:[#allocation8 + $0x50] sm:$0xff] %v931
      %948 = vst [vmem:[#allocation8 + $0x58] sm:$0xff] %v932
      %949 = vst [vmem:[#allocation8 + $0x60] sm:$0xff] %v933
      %950 = vst [vmem:[#allocation8 + $0x68] sm:$0xff] %v934
      %951 = vst [vmem:[#allocation8 + $0x70] sm:$0xff] %v935
      %952 = vst [vmem:[#allocation8 + $0x78] sm:$0xff] %v936
    $region29: #{tpu_custom_call.1} parent=1 // pred_fallthru
      _
    // Predicated region
    $region30: #{tpu_custom_call.1} parent=1 // pred_check
      _
    $region31: #{tpu_custom_call.1} parent=1 // pred_check_branch
      %954 = sbr.rel (0) target = $region33
    $region32: #{tpu_custom_call.1} parent=1 // pred_region
      %s956 = ssub.s32 2048, 2048
      %957 = vsyncadd [#allocation5], %s956
      %s958 = sshll.u32 [#allocation8], 4
      %s959 = int_to_ptr.vmem [resolvable:$true] %s958
      %964 = dma.vmem_to_hbm [thread:$0]  %s959, 2048, %s2, [#allocation5], 128, 128, 8
    $region33: #{tpu_custom_call.1} parent=1 // pred_fallthru
      _
    // Predicated region
    $region34: #{tpu_custom_call.1} parent=1 // pred_check
      _
    $region35: #{tpu_custom_call.1} parent=1 // pred_check_branch
      %966 = sbr.rel (0) target = $region37
    $region36: #{tpu_custom_call.1} parent=1 // pred_region
      %967 = dma.done [#allocation5], 2048
    $region37: #{tpu_custom_call.1} parent=1 // pred_fallthru
      _
    %968 = vsyncpa [#allocation4], 1
    %969 = vsyncpa [#allocation7], 1
    %970 = vsyncpa [#allocation5], 1

</llo_original>
